<compile_context>
chip_gen: v6e
topology: v6e:2x2x1
jax: 0.10.0
libtpu: 0.0.40
codegen_flags: <defaults>
</compile_context>

<pallas_src>
import jax
import jax.numpy as jnp
from jax.experimental import pallas as pl
from jax.experimental.pallas import tpu as pltpu

LANE = 128        # vreg lane width (hidden dim padded to this, once, at init)
MAX_TILE_B = 512  # rows per grid step for large batches


def _round_up(n, m):
    return ((n + m - 1) // m) * m


def _mlp_kernel(x_ref, w1_ref, b1_ref, w2_ref, b2_ref, o_ref):
    # linear1 on the MXU with f32 accumulation; bias + ReLU on the VPU.
    h = jnp.dot(x_ref[...], w1_ref[...], preferred_element_type=jnp.float32)
    h = jnp.maximum(h + b1_ref[...], 0.0)      # f32 throughout (PyTorch semantics)
    # linear2: h stays float32; output written at its real (narrow) width.
    y = jnp.dot(h, w2_ref[...], preferred_element_type=jnp.float32)
    o_ref[...] = (y + b2_ref[...]).astype(o_ref.dtype)


def prepare_params(w1, b1, w2, b2):
    """One-time parameter prep, hoisted out of the per-forward path.

    * biases -> [1, n] rows (broadcast-ready inside the kernel)
    * hidden dim zero-padded to a multiple of 128 (lane-dense intermediate);
      padding is numerically exact (padded hidden lanes are 0 after ReLU and
      padded w2 rows contribute 0 to every real output element).
    """
    n_in, n_hidden = w1.shape
    n_out = w2.shape[1]
    n_h_p = _round_up(n_hidden, LANE)
    w1p = jnp.zeros((n_in, n_h_p), w1.dtype).at[:, :n_hidden].set(w1)
    b1p = jnp.zeros((1, n_h_p), b1.dtype).at[0, :n_hidden].set(b1)
    w2p = jnp.zeros((n_h_p, n_out), w2.dtype).at[:n_hidden, :].set(w2)
    b2p = b2.reshape(1, n_out)
    return w1p, b1p, w2p, b2p


def linear_qnet_forward(x, w1p, b1p, w2p, b2p):
    """Fused MLP forward.

    x:   [batch, n_in]                      (unpadded)
    w1p: [n_in, n_h_p],  b1p: [1, n_h_p]    (from prepare_params)
    w2p: [n_h_p, n_out], b2p: [1, n_out]
    Returns [batch, n_out] with the same dtype as x.
    """
    batch, n_in = x.shape
    n_h_p = w1p.shape[1]
    n_out = w2p.shape[1]
    dtype = x.dtype

    # Batch tiling: one grid step when the whole batch fits in a 512-row tile
    # (no padding, no output row-slice); otherwise 512-row tiles (multiple of
    # 8 sublanes), which also gives the v7x dual-TC "parallel" axis real work.
    if batch <= MAX_TILE_B:
        tile_b = batch
        b_pad = batch
    else:
        tile_b = MAX_TILE_B
        b_pad = _round_up(batch, tile_b)

    x_in = x if b_pad == batch else jnp.zeros((b_pad, n_in), dtype).at[:batch].set(x)

    grid = (b_pad // tile_b,)

    # VMEM footprint guard (only kicks in if the net scales): double-buffered
    # x / y tiles + (double-buffered by default) constant weight/bias blocks.
    itemsize = jnp.dtype(dtype).itemsize
    w_itemsize = jnp.dtype(w1p.dtype).itemsize
    vmem_est = (2 * tile_b * (n_in + n_out) * itemsize
                + 2 * (n_in * n_h_p + n_h_p * n_out + n_h_p + n_out) * w_itemsize
                + (1 << 20))
    compiler_kwargs = dict(dimension_semantics=("parallel",))
    if vmem_est > (16 << 20):  # above v5e's scoped-VMEM default -> set explicitly
        compiler_kwargs["vmem_limit_bytes"] = int(min(2 * vmem_est, 100 << 20))

    out = pl.pallas_call(
        _mlp_kernel,
        out_shape=jax.ShapeDtypeStruct((b_pad, n_out), dtype),
        grid=grid,
        in_specs=[
            # x: one batch tile per grid step (double-buffered by the pipeline);
            # last dim equals the full array dim, so no lane padding needed.
            pl.BlockSpec((tile_b, n_in), lambda i: (i, 0)),
            # Weights / biases: full-array blocks with constant index_map ->
            # fetched once and VMEM-resident across all grid steps.
            pl.BlockSpec((n_in, n_h_p), lambda i: (0, 0)),
            pl.BlockSpec((1, n_h_p), lambda i: (0, 0)),
            pl.BlockSpec((n_h_p, n_out), lambda i: (0, 0)),
            pl.BlockSpec((1, n_out), lambda i: (0, 0)),
        ],
        # Output written at its real width: no padded writeback, no XLA slice.
        out_specs=pl.BlockSpec((tile_b, n_out), lambda i: (i, 0)),
        compiler_params=pltpu.CompilerParams(**compiler_kwargs),
    )(x_in, w1p, b1p, w2p, b2p)

    return out if b_pad == batch else out[:batch]


def init_params(key, n_in, n_hidden, n_out, dtype=jnp.float32):
    """Deterministic init mimicking nn.Linear's uniform(-1/sqrt(fan_in), 1/sqrt(fan_in))."""
    k1, k2, k3, k4 = jax.random.split(key, 4)
    lim1 = 1.0 / jnp.sqrt(n_in)
    lim2 = 1.0 / jnp.sqrt(n_hidden)
    w1 = jax.random.uniform(k1, (n_in, n_hidden), dtype, -lim1, lim1)
    b1 = jax.random.uniform(k2, (n_hidden,), dtype, -lim1, lim1)
    w2 = jax.random.uniform(k3, (n_hidden, n_out), dtype, -lim2, lim2)
    b2 = jax.random.uniform(k4, (n_out,), dtype, -lim2, lim2)
    return w1, b1, w2, b2


# TODO(synk): LinearQNet.load()/save() (torch file I/O, state_dict hashing) have
# no Pallas equivalent and are intentionally not implemented.

if __name__ == "__main__":
    # Small shapes consistent with a LinearQNet forward pass.
    n_in, n_hidden, n_out = 16, 32, 4
    batch = 64

    key = jax.random.PRNGKey(0)
    kx, kp = jax.random.split(key)
    x = jax.random.normal(kx, (batch, n_in), jnp.float32)
    w1, b1, w2, b2 = init_params(kp, n_in, n_hidden, n_out)

    # One-time param prep (hoisted out of the per-call path).
    w1p, b1p, w2p, b2p = prepare_params(w1, b1, w2, b2)
    w1p, b1p, w2p, b2p = jax.block_until_ready((w1p, b1p, w2p, b2p))

    out = linear_qnet_forward(x, w1p, b1p, w2p, b2p)
    out = jax.block_until_ready(out)

    # Pure-JAX reference (same semantics as the PyTorch forward).
    ref = jnp.maximum(x @ w1 + b1, 0.0) @ w2 + b2
    assert out.shape == (batch, n_out)
    assert jnp.allclose(out, ref, atol=1e-5, rtol=1e-5)

    print("KERNEL_OK")
</pallas_src>

<mosaic_0001>
module attributes {stable_mosaic.version = 11 : i64} {
  func.func @_mlp_kernel(%arg0: i32, %arg1: memref<64x16xf32, #tpu.memory_space<vmem>>, %arg2: memref<16x128xf32, #tpu.memory_space<vmem>>, %arg3: memref<1x128xf32, #tpu.memory_space<vmem>>, %arg4: memref<128x4xf32, #tpu.memory_space<vmem>>, %arg5: memref<1x4xf32, #tpu.memory_space<vmem>>, %arg6: memref<64x4xf32, #tpu.memory_space<vmem>>) attributes {dimension_semantics = [#tpu.dimension_semantics<parallel>], iteration_bounds = array<i64: 1>, scalar_prefetch = 0 : i64, scratch_operands = 0 : i64, tpu.core_type = #tpu.core_type<tc>, window_params = [{transform_indices = @transform_0, window_bounds = array<i64: 64, 16>}, {pipeline_mode = #tpu.pipeline_mode<synchronous>, transform_indices = @transform_1, window_bounds = array<i64: 16, 128>}, {pipeline_mode = #tpu.pipeline_mode<synchronous>, transform_indices = @transform_2, window_bounds = array<i64: 1, 128>}, {pipeline_mode = #tpu.pipeline_mode<synchronous>, transform_indices = @transform_3, window_bounds = array<i64: 128, 4>}, {pipeline_mode = #tpu.pipeline_mode<synchronous>, transform_indices = @transform_4, window_bounds = array<i64: 1, 4>}, {transform_indices = @transform_5, window_bounds = array<i64: 64, 4>}]} {
    %c0 = arith.constant 0 : index
    %c0_0 = arith.constant 0 : index
    %0 = vector.load %arg1[%c0, %c0_0] : memref<64x16xf32, #tpu.memory_space<vmem>>, vector<64x16xf32>
    %c0_1 = arith.constant 0 : index
    %c0_2 = arith.constant 0 : index
    %1 = vector.load %arg2[%c0_1, %c0_2] : memref<16x128xf32, #tpu.memory_space<vmem>>, vector<16x128xf32>
    %cst = arith.constant dense<0.000000e+00> : vector<64x128xf32>
    %2 = tpu.matmul %0, %1, %cst {dimension_numbers = #tpu.dot_dimension_numbers<[1], [0], [0], [1], [0, 0, 1, 1], [], []>} : vector<64x16xf32>, vector<16x128xf32>, vector<64x128xf32> -> vector<64x128xf32>
    %c0_3 = arith.constant 0 : index
    %c0_4 = arith.constant 0 : index
    %3 = vector.load %arg3[%c0_3, %c0_4] : memref<1x128xf32, #tpu.memory_space<vmem>>, vector<1x128xf32>
    %4 = vector.broadcast %3 : vector<1x128xf32> to vector<64x128xf32>
    %5 = arith.addf %2, %4 : vector<64x128xf32>
    %cst_5 = arith.constant 0.000000e+00 : f32
    %6 = vector.broadcast %cst_5 : f32 to vector<64x128xf32>
    %7 = arith.maximumf %5, %6 : vector<64x128xf32>
    %c0_6 = arith.constant 0 : index
    %c0_7 = arith.constant 0 : index
    %8 = vector.load %arg4[%c0_6, %c0_7] : memref<128x4xf32, #tpu.memory_space<vmem>>, vector<128x4xf32>
    %cst_8 = arith.constant dense<0.000000e+00> : vector<64x4xf32>
    %9 = tpu.matmul %7, %8, %cst_8 {dimension_numbers = #tpu.dot_dimension_numbers<[1], [0], [0], [1], [0, 0, 1, 1], [], []>} : vector<64x128xf32>, vector<128x4xf32>, vector<64x4xf32> -> vector<64x4xf32>
    %c0_9 = arith.constant 0 : index
    %c0_10 = arith.constant 0 : index
    %10 = vector.load %arg5[%c0_9, %c0_10] : memref<1x4xf32, #tpu.memory_space<vmem>>, vector<1x4xf32>
    %11 = vector.broadcast %10 : vector<1x4xf32> to vector<64x4xf32>
    %12 = arith.addf %9, %11 : vector<64x4xf32>
    %c0_11 = arith.constant 0 : index
    %c0_12 = arith.constant 0 : index
    %13 = vector.load %arg6[%c0_11, %c0_12] : memref<64x4xf32, #tpu.memory_space<vmem>>, vector<64x4xf32>
    tpu.vector_store %arg6[%c0_11, %c0_12], %12 {strides = array<i32>} : memref<64x4xf32, #tpu.memory_space<vmem>>, vector<64x4xf32>,
    return
  }
  func.func @transform_0(%arg0: i32) -> (i32, i32) {
    %c0_i32 = arith.constant 0 : i32
    %c0_i32_0 = arith.constant 0 : i32
    return %arg0, %c0_i32 : i32, i32
  }
  func.func @transform_1(%arg0: i32) -> (i32, i32) {
    %c0_i32 = arith.constant 0 : i32
    %c0_i32_0 = arith.constant 0 : i32
    %c0_i32_1 = arith.constant 0 : i32
    return %c0_i32, %c0_i32_0 : i32, i32
  }
  func.func @transform_2(%arg0: i32) -> (i32, i32) {
    %c0_i32 = arith.constant 0 : i32
    %c0_i32_0 = arith.constant 0 : i32
    %c0_i32_1 = arith.constant 0 : i32
    return %c0_i32, %c0_i32_0 : i32, i32
  }
  func.func @transform_3(%arg0: i32) -> (i32, i32) {
    %c0_i32 = arith.constant 0 : i32
    %c0_i32_0 = arith.constant 0 : i32
    %c0_i32_1 = arith.constant 0 : i32
    return %c0_i32, %c0_i32_0 : i32, i32
  }
  func.func @transform_4(%arg0: i32) -> (i32, i32) {
    %c0_i32 = arith.constant 0 : i32
    %c0_i32_0 = arith.constant 0 : i32
    %c0_i32_1 = arith.constant 0 : i32
    return %c0_i32, %c0_i32_0 : i32, i32
  }
  func.func @transform_5(%arg0: i32) -> (i32, i32) {
    %c0_i32 = arith.constant 0 : i32
    %c0_i32_0 = arith.constant 0 : i32
    return %arg0, %c0_i32 : i32, i32
  }
}

</mosaic_0001>

<llo_original>
// kernel: tpu_custom_call.1
$region0: #{tpu_custom_call.1}
  #allocation0 [shape = 'u32[]', space=smem, size = 0x4, offset = 0x4, fixed_abs, tag = 'smem constant byte address 0x4 - core index']
  #allocation1 [shape = 'u32[144,128]{1,0:T(1,128)}', space=vmem, size = 0x12000, scoped, tag = 'internal scratch']
  %s0 = inlined_call_operand.vmem [shape: f32[64,16], index: 0, kind: input, shape index: {}]
  %s1 = inlined_call_operand.vmem [shape: f32[16,128], index: 1, kind: input, shape index: {}]
  %s2 = inlined_call_operand.vmem [shape: f32[1,128], index: 2, kind: input, shape index: {}]
  %s3 = inlined_call_operand.vmem [shape: f32[128,4], index: 3, kind: input, shape index: {}]
  %s4 = inlined_call_operand.vmem [shape: f32[1,4], index: 4, kind: input, shape index: {}]
  %s5 = inlined_call_operand.vmem [shape: f32[64,4], index: 5, kind: output, shape index: {}]
  %s6 = sld [smem:[#allocation0]]
  $region30: #{tpu_custom_call.1} parent=0
    _
  %s8 = ssub.s32 1, %s6
  %s9 = scalar_select 0, %s8, %s6
  // Predicated region
  $region2: #{tpu_custom_call.1} parent=0 // pred_check
    _
  $region3: #{tpu_custom_call.1} parent=0 // pred_check_branch
    %11 = sbr.rel (0) target = $region5
  $region4: #{tpu_custom_call.1} parent=0 // pred_region
    _
  $region5: #{tpu_custom_call.1} parent=0 // pred_fallthru
    _
  // Predicated region
  $region6: #{tpu_custom_call.1} parent=0 // pred_check
    _
  $region7: #{tpu_custom_call.1} parent=0 // pred_check_branch
    %13 = sbr.rel (0) target = $region9
  $region8: #{tpu_custom_call.1} parent=0 // pred_region
    _
  $region9: #{tpu_custom_call.1} parent=0 // pred_fallthru
    _
  // Predicated region
  $region10: #{tpu_custom_call.1} parent=0 // pred_check
    _
  $region11: #{tpu_custom_call.1} parent=0 // pred_check_branch
    %15 = sbr.rel (0) target = $region13
  $region12: #{tpu_custom_call.1} parent=0 // pred_region
    _
  $region13: #{tpu_custom_call.1} parent=0 // pred_fallthru
    _
  // Predicated region
  $region14: #{tpu_custom_call.1} parent=0 // pred_check
    _
  $region15: #{tpu_custom_call.1} parent=0 // pred_check_branch
    %17 = sbr.rel (0) target = $region17
  $region16: #{tpu_custom_call.1} parent=0 // pred_region
    _
  $region17: #{tpu_custom_call.1} parent=0 // pred_fallthru
    _
  // Predicated region
  $region18: #{tpu_custom_call.1} parent=0 // pred_check
    _
  $region19: #{tpu_custom_call.1} parent=0 // pred_check_branch
    %19 = sbr.rel (0) target = $region21
  $region20: #{tpu_custom_call.1} parent=0 // pred_region
    _
  $region21: #{tpu_custom_call.1} parent=0 // pred_fallthru
    _
  %v20 = vld [vmem:[%s0] sm:$0xff]
  %v21 = vld [vmem:[%s0 + $0x8] sm:$0xff]
  %v22 = vld [vmem:[%s0 + $0x10] sm:$0xff]
  %v23 = vld [vmem:[%s0 + $0x18] sm:$0xff]
  %v24 = vld [vmem:[%s0 + $0x20] sm:$0xff]
  %v25 = vld [vmem:[%s0 + $0x28] sm:$0xff]
  %v26 = vld [vmem:[%s0 + $0x30] sm:$0xff]
  %v27 = vld [vmem:[%s0 + $0x38] sm:$0xff]
  %v28 = vld [vmem:[%s1] sm:$0xff]
  %v29 = vld [vmem:[%s1 + $0x8] sm:$0xff]
  %v30 = vld [vmem:[%s2] sm:$0x1]
  %v32 = vlaneseq
  %v33 = vshrl.u32 %v32, 7
  %v34 = vsub.s32 0, %v33
  %v35 = vrot.slane %v30, %v34
  %vm37 = vcmask 130048
  %v39 = vsel %vm37, %v20, 0
  %v42 = vsel %vm37, %v21, 0
  %v45 = vsel %vm37, %v22, 0
  %v48 = vsel %vm37, %v23, 0
  %v51 = vsel %vm37, %v24, 0
  %v54 = vsel %vm37, %v25, 0
  %v57 = vsel %vm37, %v26, 0
  %v60 = vsel %vm37, %v27, 0
  %62 = vmatprep.subr.mxu0 0.0
  %63 = vmatpush1.msra.mxu0 0.0
  %64 = vmatprep.subr.mxu0 0.0
  %65 = vmatpush1.msra.mxu0 0.0
  %66 = vmatprep.subr.mxu0 0.0
  %67 = vmatpush1.msra.mxu0 0.0
  %68 = vmatprep.subr.mxu0 0.0
  %69 = vmatpush1.msra.mxu0 0.0
  %70 = vmatprep.subr.mxu0 0.0
  %71 = vmatpush1.msra.mxu0 0.0
  %72 = vmatprep.subr.mxu0 0.0
  %73 = vmatpush1.msra.mxu0 0.0
  %74 = vmatprep.subr.mxu0 0.0
  %75 = vmatpush1.msra.mxu0 0.0
  %76 = vmatprep.subr.mxu0 0.0
  %77 = vmatpush1.msra.mxu0 0.0
  %78 = vmatprep.subr.mxu0 0.0
  %79 = vmatpush1.msra.mxu0 0.0
  %80 = vmatprep.subr.mxu0 0.0
  %81 = vmatpush1.msra.mxu0 0.0
  %82 = vmatprep.subr.mxu0 0.0
  %83 = vmatpush1.msra.mxu0 0.0
  %84 = vmatprep.subr.mxu0 0.0
  %85 = vmatpush1.msra.mxu0 0.0
  %86 = vmatprep.subr.mxu0 0.0
  %87 = vmatpush1.msra.mxu0 0.0
  %88 = vmatprep.subr.mxu0 0.0
  %89 = vmatpush1.msra.mxu0 0.0
  %90 = vmatprep.subr.mxu0 0.0
  %91 = vmatpush1.msra.mxu0 %v29
  %92 = vmatprep.subr.mxu0 0.0
  %93 = vmatpush1.msra.mxu0 %v28
  %94 = vmatprep.subr.mxu0 0.0
  %95 = vmatpush2.msra.mxu0 0.0
  %96 = vmatprep.subr.mxu0 0.0
  %97 = vmatpush2.msra.mxu0 0.0
  %98 = vmatprep.subr.mxu0 0.0
  %99 = vmatpush2.msra.mxu0 0.0
  %100 = vmatprep.subr.mxu0 0.0
  %101 = vmatpush2.msra.mxu0 0.0
  %102 = vmatprep.subr.mxu0 0.0
  %103 = vmatpush2.msra.mxu0 0.0
  %104 = vmatprep.subr.mxu0 0.0
  %105 = vmatpush2.msra.mxu0 0.0
  %106 = vmatprep.subr.mxu0 0.0
  %107 = vmatpush2.msra.mxu0 0.0
  %108 = vmatprep.subr.mxu0 0.0
  %109 = vmatpush2.msra.mxu0 0.0
  %110 = vmatprep.subr.mxu0 0.0
  %111 = vmatpush2.msra.mxu0 0.0
  %112 = vmatprep.subr.mxu0 0.0
  %113 = vmatpush2.msra.mxu0 0.0
  %114 = vmatprep.subr.mxu0 0.0
  %115 = vmatpush2.msra.mxu0 0.0
  %116 = vmatprep.subr.mxu0 0.0
  %117 = vmatpush2.msra.mxu0 0.0
  %118 = vmatprep.subr.mxu0 0.0
  %119 = vmatpush2.msra.mxu0 0.0
  %120 = vmatprep.subr.mxu0 0.0
  %121 = vmatpush2.msra.mxu0 0.0
  %122 = vmatprep.subr.mxu0 0.0
  %123 = vmatpush2.msra.mxu0 0.0
  %124 = vmatprep.subr.mxu0 0.0
  %125 = vmatpush2.msra.mxu0 0.0
  %126 = vmatprep.mubr.f32.mxu0 0.0
  %127 = vmatmul.mubr.f32.gmra.mxu0 %v39
  %v128 = vpop.f32.mrf.mxu0
  %v129 = vadd.f32 %v35, %v128
  %v130 = vpop.f32.mrf.mxu0
  %131 = vmatprep.mubr.f32.mxu0 0.0
  %132 = vmatmul.mubr.f32.gmra.mxu0 %v42
  %v133 = vpop.f32.mrf.mxu0
  %v134 = vadd.f32 %v35, %v133
  %v135 = vpop.f32.mrf.mxu0
  %136 = vmatprep.mubr.f32.mxu0 0.0
  %137 = vmatmul.mubr.f32.gmra.mxu0 %v45
  %v138 = vpop.f32.mrf.mxu0
  %v139 = vadd.f32 %v35, %v138
  %v140 = vpop.f32.mrf.mxu0
  %141 = vmatprep.mubr.f32.mxu0 0.0
  %142 = vmatmul.mubr.f32.gmra.mxu0 %v48
  %v143 = vpop.f32.mrf.mxu0
  %v144 = vadd.f32 %v35, %v143
  %v145 = vpop.f32.mrf.mxu0
  %146 = vmatprep.mubr.f32.mxu0 0.0
  %147 = vmatmul.mubr.f32.gmra.mxu0 %v51
  %v148 = vpop.f32.mrf.mxu0
  %v149 = vadd.f32 %v35, %v148
  %v150 = vpop.f32.mrf.mxu0
  %151 = vmatprep.mubr.f32.mxu0 0.0
  %152 = vmatmul.mubr.f32.gmra.mxu0 %v54
  %v153 = vpop.f32.mrf.mxu0
  %v154 = vadd.f32 %v35, %v153
  %v155 = vpop.f32.mrf.mxu0
  %156 = vmatprep.mubr.f32.mxu0 0.0
  %157 = vmatmul.mubr.f32.gmra.mxu0 %v57
  %v158 = vpop.f32.mrf.mxu0
  %v159 = vadd.f32 %v35, %v158
  %v160 = vpop.f32.mrf.mxu0
  %161 = vmatprep.mubr.f32.mxu0 0.0
  %162 = vmatmul.mubr.f32.gmra.mxu0 %v60
  %v163 = vpop.f32.mrf.mxu0
  %v164 = vadd.f32 %v35, %v163
  %v165 = vpop.f32.mrf.mxu0
  %166 = vdwg.mxu0
  %v167 = vmax.f32 %v129, 0.0
  %v168 = vmax.f32 %v134, 0.0
  %v169 = vmax.f32 %v139, 0.0
  %v170 = vmax.f32 %v144, 0.0
  %v171 = vmax.f32 %v149, 0.0
  %v172 = vmax.f32 %v154, 0.0
  %v173 = vmax.f32 %v159, 0.0
  %v174 = vmax.f32 %v164, 0.0
  %v175 = vld [vmem:[%s3] sm:$0xff]
  %v176 = vld [vmem:[%s3 + $0x8] sm:$0xff]
  %v177 = vld [vmem:[%s3 + $0x10] sm:$0xff]
  %v178 = vld [vmem:[%s3 + $0x18] sm:$0xff]
  %v179 = vld [vmem:[%s3 + $0x20] sm:$0xff]
  %v180 = vld [vmem:[%s3 + $0x28] sm:$0xff]
  %v181 = vld [vmem:[%s3 + $0x30] sm:$0xff]
  %v182 = vld [vmem:[%s3 + $0x38] sm:$0xff]
  %v183 = vld [vmem:[%s3 + $0x40] sm:$0xff]
  %v184 = vld [vmem:[%s3 + $0x48] sm:$0xff]
  %v185 = vld [vmem:[%s3 + $0x50] sm:$0xff]
  %v186 = vld [vmem:[%s3 + $0x58] sm:$0xff]
  %v187 = vld [vmem:[%s3 + $0x60] sm:$0xff]
  %v188 = vld [vmem:[%s3 + $0x68] sm:$0xff]
  %v189 = vld [vmem:[%s3 + $0x70] sm:$0xff]
  %v190 = vld [vmem:[%s3 + $0x78] sm:$0xff]
  %v191 = vld [vmem:[%s4] sm:$0x1]
  %v193 = vlaneseq
  %v194 = vshrl.u32 %v193, 7
  %v195 = vsub.s32 0, %v194
  %v196 = vrot.slane %v191, %v195
  %198 = vmatprep.subr.mxu0 0.0
  %199 = vmatpush1.msra.mxu0 %v190
  %200 = vmatprep.subr.mxu0 0.0
  %201 = vmatpush1.msra.mxu0 %v189
  %202 = vmatprep.subr.mxu0 0.0
  %203 = vmatpush1.msra.mxu0 %v188
  %204 = vmatprep.subr.mxu0 0.0
  %205 = vmatpush1.msra.mxu0 %v187
  %206 = vmatprep.subr.mxu0 0.0
  %207 = vmatpush1.msra.mxu0 %v186
  %208 = vmatprep.subr.mxu0 0.0
  %209 = vmatpush1.msra.mxu0 %v185
  %210 = vmatprep.subr.mxu0 0.0
  %211 = vmatpush1.msra.mxu0 %v184
  %212 = vmatprep.subr.mxu0 0.0
  %213 = vmatpush1.msra.mxu0 %v183
  %214 = vmatprep.subr.mxu0 0.0
  %215 = vmatpush1.msra.mxu0 %v182
  %216 = vmatprep.subr.mxu0 0.0
  %217 = vmatpush1.msra.mxu0 %v181
  %218 = vmatprep.subr.mxu0 0.0
  %219 = vmatpush1.msra.mxu0 %v180
  %220 = vmatprep.subr.mxu0 0.0
  %221 = vmatpush1.msra.mxu0 %v179
  %222 = vmatprep.subr.mxu0 0.0
  %223 = vmatpush1.msra.mxu0 %v178
  %224 = vmatprep.subr.mxu0 0.0
  %225 = vmatpush1.msra.mxu0 %v177
  %226 = vmatprep.subr.mxu0 0.0
  %227 = vmatpush1.msra.mxu0 %v176
  %228 = vmatprep.subr.mxu0 0.0
  %229 = vmatpush1.msra.mxu0 %v175
  %230 = vmatprep.subr.mxu0 0.0
  %231 = vmatpush2.msra.mxu0 0.0
  %232 = vmatprep.subr.mxu0 0.0
  %233 = vmatpush2.msra.mxu0 0.0
  %234 = vmatprep.subr.mxu0 0.0
  %235 = vmatpush2.msra.mxu0 0.0
  %236 = vmatprep.subr.mxu0 0.0
  %237 = vmatpush2.msra.mxu0 0.0
  %238 = vmatprep.subr.mxu0 0.0
  %239 = vmatpush2.msra.mxu0 0.0
  %240 = vmatprep.subr.mxu0 0.0
  %241 = vmatpush2.msra.mxu0 0.0
  %242 = vmatprep.subr.mxu0 0.0
  %243 = vmatpush2.msra.mxu0 0.0
  %244 = vmatprep.subr.mxu0 0.0
  %245 = vmatpush2.msra.mxu0 0.0
  %246 = vmatprep.subr.mxu0 0.0
  %247 = vmatpush2.msra.mxu0 0.0
  %248 = vmatprep.subr.mxu0 0.0
  %249 = vmatpush2.msra.mxu0 0.0
  %250 = vmatprep.subr.mxu0 0.0
  %251 = vmatpush2.msra.mxu0 0.0
  %252 = vmatprep.subr.mxu0 0.0
  %253 = vmatpush2.msra.mxu0 0.0
  %254 = vmatprep.subr.mxu0 0.0
  %255 = vmatpush2.msra.mxu0 0.0
  %256 = vmatprep.subr.mxu0 0.0
  %257 = vmatpush2.msra.mxu0 0.0
  %258 = vmatprep.subr.mxu0 0.0
  %259 = vmatpush2.msra.mxu0 0.0
  %260 = vmatprep.subr.mxu0 0.0
  %261 = vmatpush2.msra.mxu0 0.0
  %262 = vmatprep.mubr.f32.mxu0 0.0
  %263 = vmatmul.mubr.f32.gmra.mxu0 %v167
  %v264 = vpop.f32.mrf.mxu0
  %v265 = vadd.f32 %v196, %v264
  %v266 = vpop.f32.mrf.mxu0
  %267 = vmatprep.mubr.f32.mxu0 0.0
  %268 = vmatmul.mubr.f32.gmra.mxu0 %v168
  %v269 = vpop.f32.mrf.mxu0
  %v270 = vadd.f32 %v196, %v269
  %v271 = vpop.f32.mrf.mxu0
  %272 = vmatprep.mubr.f32.mxu0 0.0
  %273 = vmatmul.mubr.f32.gmra.mxu0 %v169
  %v274 = vpop.f32.mrf.mxu0
  %v275 = vadd.f32 %v196, %v274
  %v276 = vpop.f32.mrf.mxu0
  %277 = vmatprep.mubr.f32.mxu0 0.0
  %278 = vmatmul.mubr.f32.gmra.mxu0 %v170
  %v279 = vpop.f32.mrf.mxu0
  %v280 = vadd.f32 %v196, %v279
  %v281 = vpop.f32.mrf.mxu0
  %282 = vmatprep.mubr.f32.mxu0 0.0
  %283 = vmatmul.mubr.f32.gmra.mxu0 %v171
  %v284 = vpop.f32.mrf.mxu0
  %v285 = vadd.f32 %v196, %v284
  %v286 = vpop.f32.mrf.mxu0
  %287 = vmatprep.mubr.f32.mxu0 0.0
  %288 = vmatmul.mubr.f32.gmra.mxu0 %v172
  %v289 = vpop.f32.mrf.mxu0
  %v290 = vadd.f32 %v196, %v289
  %v291 = vpop.f32.mrf.mxu0
  %292 = vmatprep.mubr.f32.mxu0 0.0
  %293 = vmatmul.mubr.f32.gmra.mxu0 %v173
  %v294 = vpop.f32.mrf.mxu0
  %v295 = vadd.f32 %v196, %v294
  %v296 = vpop.f32.mrf.mxu0
  %297 = vmatprep.mubr.f32.mxu0 0.0
  %298 = vmatmul.mubr.f32.gmra.mxu0 %v174
  %v299 = vpop.f32.mrf.mxu0
  %v300 = vadd.f32 %v196, %v299
  %v301 = vpop.f32.mrf.mxu0
  %302 = vdwg.mxu0
  %vm303 = vcmask 31744
  %304 = vst.msk [vmem:[%s5] sm:$0xff] %vm303, %v265
  %305 = vst.msk [vmem:[%s5 + $0x8] sm:$0xff] %vm303, %v270
  %306 = vst.msk [vmem:[%s5 + $0x10] sm:$0xff] %vm303, %v275
  %307 = vst.msk [vmem:[%s5 + $0x18] sm:$0xff] %vm303, %v280
  %308 = vst.msk [vmem:[%s5 + $0x20] sm:$0xff] %vm303, %v285
  %309 = vst.msk [vmem:[%s5 + $0x28] sm:$0xff] %vm303, %v290
  %310 = vst.msk [vmem:[%s5 + $0x30] sm:$0xff] %vm303, %v295
  %311 = vst.msk [vmem:[%s5 + $0x38] sm:$0xff] %vm303, %v300
  // Predicated region
  $region22: #{tpu_custom_call.1} parent=0 // pred_check
    _
  $region23: #{tpu_custom_call.1} parent=0 // pred_check_branch
    %313 = sbr.rel (0) target = $region25
  $region24: #{tpu_custom_call.1} parent=0 // pred_region
    _
  $region25: #{tpu_custom_call.1} parent=0 // pred_fallthru
    _
  // Predicated region
  $region26: #{tpu_custom_call.1} parent=0 // pred_check
    _
  $region27: #{tpu_custom_call.1} parent=0 // pred_check_branch
    %315 = sbr.rel (0) target = $region29
  $region28: #{tpu_custom_call.1} parent=0 // pred_region
    _
  $region29: #{tpu_custom_call.1} parent=0 // pred_fallthru
    _

</llo_original>
